<compile_context>
chip_gen: v6e
topology: v6e:2x2x1
jax: 0.10.0
libtpu: 0.0.40
codegen_flags: <defaults>
</compile_context>

<pallas_src>
import math

import jax
import jax.numpy as jnp
from jax.experimental import pallas as pl
from jax.experimental.pallas import tpu as pltpu


def _mish(z):
    # z * tanh(softplus(z)) with an overflow-safe softplus (EUP ops: exp/log1p/tanh).
    sp = jnp.maximum(z, 0.0) + jnp.log1p(jnp.exp(-jnp.abs(z)))
    return z * jnp.tanh(sp)


def film_kernel(x_ref, cond_ref, w_ref, b_ref, out_ref):
    x = x_ref[...].astype(jnp.float32)      # (bm, D)
    c = cond_ref[...].astype(jnp.float32)   # (bm, C)
    d = x.shape[1]

    m = _mish(c)                            # Mish on the conditioning vector
    # Single fused MXU matmul against the packed [scale cols | bias cols] table.
    film = jnp.dot(m, w_ref[...], preferred_element_type=jnp.float32) + b_ref[...]
    scale = film[:, :d]                     # static, lane-dense slices
    bias = film[:, d:]
    out_ref[...] = (scale * x + bias).astype(out_ref.dtype)


def pack_film_params(w_pt, b_pt):
    """Convert PyTorch Linear params (w: (2D, C), b: (2D,)) to the packed kernel
    layout: w_packed (C, 2D) and b_packed (1, 2D) with the first D output columns
    equal to the scale weights (even PyTorch rows) and the last D equal to the bias
    weights (odd PyTorch rows).  Done once in the wrapper, outside the kernel."""
    two_d = w_pt.shape[0]
    perm = jnp.concatenate([jnp.arange(0, two_d, 2), jnp.arange(1, two_d, 2)])
    w_packed = jnp.transpose(w_pt)[:, perm]          # (C, 2D)
    b_packed = b_pt[perm].reshape(1, two_d)          # (1, 2D)
    return w_packed, b_packed


def film_forward(x, cond, w_packed, b_packed, *, block_rows=512):
    B, D = x.shape
    C = cond.shape[1]

    # Row tile: either the whole batch (full-extent block, always legal) or a
    # sublane-aligned multiple of 8.
    if B <= block_rows:
        bm = B
    else:
        bm = (block_rows // 8) * 8
    grid = (pl.cdiv(B, bm),)

    cost = pl.CostEstimate(
        flops=2 * B * C * (2 * D) + 3 * B * D,
        transcendentals=3 * B * C,
        bytes_accessed=4 * (2 * B * D + B * C + C * 2 * D + 2 * D),
    )

    return pl.pallas_call(
        film_kernel,
        out_shape=jax.ShapeDtypeStruct((B, D), x.dtype),
        grid_spec=pltpu.PrefetchScalarGridSpec(
            num_scalar_prefetch=0,
            grid=grid,
            in_specs=[
                pl.BlockSpec((bm, D), lambda i: (i, 0)),        # x rows (streamed)
                pl.BlockSpec((bm, C), lambda i: (i, 0)),        # cond rows (streamed)
                pl.BlockSpec((C, 2 * D), lambda i: (0, 0)),     # packed weight (resident)
                pl.BlockSpec((1, 2 * D), lambda i: (0, 0)),     # packed bias (resident)
            ],
            out_specs=pl.BlockSpec((bm, D), lambda i: (i, 0)),
        ),
        compiler_params=pltpu.CompilerParams(
            dimension_semantics=("parallel",)),
        cost_estimate=cost,
    )(x, cond, w_packed, b_packed)


def film_reference(x, cond, w_pt, b_pt):
    """Pure-JAX reference mirroring the PyTorch module exactly (interleaved Linear
    output, Unflatten(-1, (-1, 2)), scale = [...,0], bias = [...,1])."""
    c = cond.astype(jnp.float32)
    m = c * jnp.tanh(jax.nn.softplus(c))
    film = m @ jnp.transpose(w_pt) + b_pt            # (B, 2D) interleaved
    B, D = x.shape
    film = film.reshape(B, D, 2)
    scale = film[:, :, 0]
    bias = film[:, :, 1]
    return scale * x + bias


def init_params(key, in_dim, cond_dim):
    """PyTorch nn.Linear default init: U(-1/sqrt(fan_in), 1/sqrt(fan_in))."""
    k1, k2 = jax.random.split(key)
    bound = 1.0 / math.sqrt(cond_dim)
    w_pt = jax.random.uniform(k1, (2 * in_dim, cond_dim), jnp.float32, -bound, bound)
    b_pt = jax.random.uniform(k2, (2 * in_dim,), jnp.float32, -bound, bound)
    return w_pt, b_pt


if __name__ == "__main__":
    # Small shapes consistent with the module: batch=8, in_dim=16, cond_dim=8.
    B, IN_DIM, COND_DIM = 8, 16, 8

    key = jax.random.PRNGKey(0)
    kx, kc, kp = jax.random.split(key, 3)
    x = jax.random.normal(kx, (B, IN_DIM), jnp.float32)
    cond = jax.random.normal(kc, (B, COND_DIM), jnp.float32)
    w_pt, b_pt = init_params(kp, IN_DIM, COND_DIM)

    w_packed, b_packed = pack_film_params(w_pt, b_pt)
    out = film_forward(x, cond, w_packed, b_packed)
    out = jax.block_until_ready(out)

    ref = film_reference(x, cond, w_pt, b_pt)
    assert out.shape == (B, IN_DIM)
    assert jnp.allclose(out, ref, atol=1e-4, rtol=1e-4), (out, ref)
    print("KERNEL_OK")
</pallas_src>

<mosaic_0001>
module attributes {stable_mosaic.version = 11 : i64} {
  func.func @film_kernel(%arg0: i32, %arg1: memref<8x16xf32, #tpu.memory_space<vmem>>, %arg2: memref<8x8xf32, #tpu.memory_space<vmem>>, %arg3: memref<8x32xf32, #tpu.memory_space<vmem>>, %arg4: memref<1x32xf32, #tpu.memory_space<vmem>>, %arg5: memref<8x16xf32, #tpu.memory_space<vmem>>) attributes {dimension_semantics = [#tpu.dimension_semantics<parallel>], iteration_bounds = array<i64: 1>, scalar_prefetch = 0 : i64, scratch_operands = 0 : i64, tpu.core_type = #tpu.core_type<tc>, window_params = [{transform_indices = @transform_0, window_bounds = array<i64: 8, 16>}, {transform_indices = @transform_1, window_bounds = array<i64: 8, 8>}, {pipeline_mode = #tpu.pipeline_mode<synchronous>, transform_indices = @transform_2, window_bounds = array<i64: 8, 32>}, {pipeline_mode = #tpu.pipeline_mode<synchronous>, transform_indices = @transform_3, window_bounds = array<i64: 1, 32>}, {transform_indices = @transform_4, window_bounds = array<i64: 8, 16>}]} {
    %c0 = arith.constant 0 : index
    %c0_0 = arith.constant 0 : index
    %0 = vector.load %arg1[%c0, %c0_0] : memref<8x16xf32, #tpu.memory_space<vmem>>, vector<8x16xf32>
    %c0_1 = arith.constant 0 : index
    %c0_2 = arith.constant 0 : index
    %1 = vector.load %arg2[%c0_1, %c0_2] : memref<8x8xf32, #tpu.memory_space<vmem>>, vector<8x8xf32>
    %cst = arith.constant 0.000000e+00 : f32
    %2 = vector.broadcast %cst : f32 to vector<8x8xf32>
    %3 = arith.maximumf %1, %2 : vector<8x8xf32>
    %4 = math.absf %1 : vector<8x8xf32>
    %cst_3 = arith.constant 0.000000e+00 : f32
    %5 = vector.broadcast %cst_3 : f32 to vector<8x8xf32>
    %6 = arith.subf %5, %4 : vector<8x8xf32>
    %7 = math.exp %6 : vector<8x8xf32>
    %8 = math.log1p %7 : vector<8x8xf32>
    %9 = arith.addf %3, %8 : vector<8x8xf32>
    %10 = math.tanh %9 : vector<8x8xf32>
    %11 = arith.mulf %1, %10 : vector<8x8xf32>
    %c0_4 = arith.constant 0 : index
    %c0_5 = arith.constant 0 : index
    %12 = vector.load %arg3[%c0_4, %c0_5] : memref<8x32xf32, #tpu.memory_space<vmem>>, vector<8x32xf32>
    %cst_6 = arith.constant dense<0.000000e+00> : vector<8x32xf32>
    %13 = tpu.matmul %11, %12, %cst_6 {dimension_numbers = #tpu.dot_dimension_numbers<[1], [0], [0], [1], [0, 0, 1, 1], [], []>} : vector<8x8xf32>, vector<8x32xf32>, vector<8x32xf32> -> vector<8x32xf32>
    %c0_7 = arith.constant 0 : index
    %c0_8 = arith.constant 0 : index
    %14 = vector.load %arg4[%c0_7, %c0_8] : memref<1x32xf32, #tpu.memory_space<vmem>>, vector<1x32xf32>
    %15 = vector.broadcast %14 : vector<1x32xf32> to vector<8x32xf32>
    %16 = arith.addf %13, %15 : vector<8x32xf32>
    %17 = vector.extract_strided_slice %16 {offsets = [0, 0], sizes = [8, 16], strides = [1, 1]} : vector<8x32xf32> to vector<8x16xf32>
    %18 = vector.extract_strided_slice %16 {offsets = [0, 16], sizes = [8, 16], strides = [1, 1]} : vector<8x32xf32> to vector<8x16xf32>
    %19 = arith.mulf %17, %0 : vector<8x16xf32>
    %20 = arith.addf %19, %18 : vector<8x16xf32>
    %c0_9 = arith.constant 0 : index
    %c0_10 = arith.constant 0 : index
    %21 = vector.load %arg5[%c0_9, %c0_10] : memref<8x16xf32, #tpu.memory_space<vmem>>, vector<8x16xf32>
    tpu.vector_store %arg5[%c0_9, %c0_10], %20 {strides = array<i32>} : memref<8x16xf32, #tpu.memory_space<vmem>>, vector<8x16xf32>,
    return
  }
  func.func @transform_0(%arg0: i32) -> (i32, i32) {
    %c0_i32 = arith.constant 0 : i32
    %c0_i32_0 = arith.constant 0 : i32
    return %arg0, %c0_i32 : i32, i32
  }
  func.func @transform_1(%arg0: i32) -> (i32, i32) {
    %c0_i32 = arith.constant 0 : i32
    %c0_i32_0 = arith.constant 0 : i32
    return %arg0, %c0_i32 : i32, i32
  }
  func.func @transform_2(%arg0: i32) -> (i32, i32) {
    %c0_i32 = arith.constant 0 : i32
    %c0_i32_0 = arith.constant 0 : i32
    %c0_i32_1 = arith.constant 0 : i32
    return %c0_i32, %c0_i32_0 : i32, i32
  }
  func.func @transform_3(%arg0: i32) -> (i32, i32) {
    %c0_i32 = arith.constant 0 : i32
    %c0_i32_0 = arith.constant 0 : i32
    %c0_i32_1 = arith.constant 0 : i32
    return %c0_i32, %c0_i32_0 : i32, i32
  }
  func.func @transform_4(%arg0: i32) -> (i32, i32) {
    %c0_i32 = arith.constant 0 : i32
    %c0_i32_0 = arith.constant 0 : i32
    return %arg0, %c0_i32 : i32, i32
  }
}

</mosaic_0001>

<llo_original>
// kernel: tpu_custom_call.1
$region0: #{tpu_custom_call.1}
  #allocation0 [shape = 'u32[]', space=smem, size = 0x4, offset = 0x4, fixed_abs, tag = 'smem constant byte address 0x4 - core index']
  #allocation1 [shape = 'u32[144,128]{1,0:T(1,128)}', space=vmem, size = 0x12000, scoped, tag = 'internal scratch']
  %s0 = inlined_call_operand.hbm [shape: f32[8,16], index: 0, kind: input, shape index: {}]
  %s1 = inlined_call_operand.hbm [shape: f32[8,8], index: 1, kind: input, shape index: {}]
  %s2 = inlined_call_operand.hbm [shape: f32[8,32], index: 2, kind: input, shape index: {}]
  %s3 = inlined_call_operand.vmem [shape: f32[1,32], index: 3, kind: input, shape index: {}]
  %s4 = inlined_call_operand.hbm [shape: f32[8,16], index: 4, kind: output, shape index: {}]
  %s5 = sld [smem:[#allocation0]]
  $region38: #{tpu_custom_call.1} parent=0
    _
  %s7 = ssub.s32 1, %s5
  %s8 = scalar_select 0, %s7, %s5
  $region1: #{tpu_custom_call.1} parent=0
    #allocation2 [shape = 'u8[4096]{0}', space=vmem, size = 0x1000, scoped, tag = 'input window, operand 0, single buffered']
    #allocation3 [shape = 's32[1]{0}', space=sflag, size = 0x4, scoped, tag = 'scoped memory for tpu_custom_call.1']
    #allocation4 [shape = 's32[1]{0}', space=sflag, size = 0x4, scoped, tag = 'scoped memory for tpu_custom_call.1']
    #allocation5 [shape = 'u8[4096]{0}', space=vmem, size = 0x1000, scoped, tag = 'input window, operand 1, single buffered']
    #allocation6 [shape = 's32[1]{0}', space=sflag, size = 0x4, scoped, tag = 'scoped memory for tpu_custom_call.1']
    #allocation7 [shape = 'u8[4096]{0}', space=vmem, size = 0x1000, scoped, tag = 'input window, operand 2, single buffered']
    #allocation8 [shape = 'u8[4096]{0}', space=vmem, size = 0x1000, scoped, tag = 'output window, operand 0, single buffered']
    %9 = vsyncpa [#allocation3], 0
    %10 = vsyncpa [#allocation6], 0
    %11 = vsyncpa [#allocation4], 0
    // Predicated region
    $region2: #{tpu_custom_call.1} parent=1 // pred_check
      _
    $region3: #{tpu_custom_call.1} parent=1 // pred_check_branch
      %13 = sbr.rel (0) target = $region5
    $region4: #{tpu_custom_call.1} parent=1 // pred_region
      %s15 = ssub.s32 128, 128
      %16 = vsyncadd [#allocation3], %s15
      %s18 = sshll.u32 [#allocation2], 4
      %s19 = int_to_ptr.vmem [resolvable:$true] %s18
      %21 = dma.hbm_to_vmem [thread:$0]  %s0, 128, %s19, [#allocation3]
    $region5: #{tpu_custom_call.1} parent=1 // pred_fallthru
      _
    // Predicated region
    $region6: #{tpu_custom_call.1} parent=1 // pred_check
      _
    $region7: #{tpu_custom_call.1} parent=1 // pred_check_branch
      %23 = sbr.rel (0) target = $region9
    $region8: #{tpu_custom_call.1} parent=1 // pred_region
      %s25 = ssub.s32 128, 128
      %26 = vsyncadd [#allocation6], %s25
      %s28 = sshll.u32 [#allocation5], 4
      %s29 = int_to_ptr.vmem [resolvable:$true] %s28
      %31 = dma.hbm_to_vmem [thread:$0]  %s1, 128, %s29, [#allocation6]
    $region9: #{tpu_custom_call.1} parent=1 // pred_fallthru
      _
    // Predicated region
    $region10: #{tpu_custom_call.1} parent=1 // pred_check
      _
    $region11: #{tpu_custom_call.1} parent=1 // pred_check_branch
      %33 = sbr.rel (0) target = $region13
    $region12: #{tpu_custom_call.1} parent=1 // pred_region
      %s35 = ssub.s32 128, 128
      %36 = vsyncadd [#allocation6], %s35
      %s38 = sshll.u32 [#allocation7], 4
      %s39 = int_to_ptr.vmem [resolvable:$true] %s38
      %41 = dma.hbm_to_vmem [thread:$0]  %s2, 128, %s39, [#allocation6]
    $region13: #{tpu_custom_call.1} parent=1 // pred_fallthru
      _
    // Predicated region
    $region14: #{tpu_custom_call.1} parent=1 // pred_check
      _
    $region15: #{tpu_custom_call.1} parent=1 // pred_check_branch
      %43 = sbr.rel (0) target = $region17
    $region16: #{tpu_custom_call.1} parent=1 // pred_region
      _
    $region17: #{tpu_custom_call.1} parent=1 // pred_fallthru
      _
    // Predicated region
    $region18: #{tpu_custom_call.1} parent=1 // pred_check
      _
    $region19: #{tpu_custom_call.1} parent=1 // pred_check_branch
      %45 = sbr.rel (0) target = $region21
    $region20: #{tpu_custom_call.1} parent=1 // pred_region
      %46 = dma.done [#allocation3], 128
    $region21: #{tpu_custom_call.1} parent=1 // pred_fallthru
      _
    // Predicated region
    $region22: #{tpu_custom_call.1} parent=1 // pred_check
      _
    $region23: #{tpu_custom_call.1} parent=1 // pred_check_branch
      %48 = sbr.rel (0) target = $region25
    $region24: #{tpu_custom_call.1} parent=1 // pred_region
      %49 = dma.done [#allocation6], 128
    $region25: #{tpu_custom_call.1} parent=1 // pred_fallthru
      _
    // Predicated region
    $region26: #{tpu_custom_call.1} parent=1 // pred_check
      _
    $region27: #{tpu_custom_call.1} parent=1 // pred_check_branch
      %51 = sbr.rel (0) target = $region29
    $region28: #{tpu_custom_call.1} parent=1 // pred_region
      %52 = dma.done [#allocation6], 128
    $region29: #{tpu_custom_call.1} parent=1 // pred_fallthru
      _
    %v53 = vld [vmem:[#allocation2] sm:$0xff]
    %v54 = vld [vmem:[#allocation5] sm:$0xff]
    %v55 = vmax.f32 %v54, 0.0
    %v56 = vand.u32 2147483647, %v54
    %v57 = vsub.f32 0.0, %v56
    %v58 = vmul.f32 %v57, 1.442695
    %v59 = vpow.pop %v58
    %v60 = vadd.f32 %v59, 1.0
    %v61 = vlog2.pop %v60
    %v62 = vmul.f32 %v61, 0.6931472
    %v63 = vmul.f32 -0.5, %v59
    %v64 = vadd.f32 %v63, 1.0
    %v65 = vmul.f32 %v64, %v59
    %v66 = vand.u32 2147483647, %v59
    %vm67 = vcmp.lt.f32.partialorder %v66, 0.0004427343
    %v68 = vsel %vm67, %v65, %v62
    %v69 = vadd.f32 %v55, %v68
    %v70 = vtanh.pop %v69
    %v71 = vmul.f32 %v54, %v70
    %v72 = vld [vmem:[#allocation7] sm:$0xff]
    %v73 = vld [vmem:[%s3] sm:$0x1]
    %v75 = vlaneseq
    %v76 = vshrl.u32 %v75, 7
    %v77 = vsub.s32 0, %v76
    %v78 = vrot.slane %v73, %v77
    %vm80 = vcmask 64512
    %v82 = vsel %vm80, %v71, 0
    %84 = vmatprep.subr.mxu0 0.0
    %85 = vmatpush1.msra.mxu0 0.0
    %86 = vmatprep.subr.mxu0 0.0
    %87 = vmatpush1.msra.mxu0 0.0
    %88 = vmatprep.subr.mxu0 0.0
    %89 = vmatpush1.msra.mxu0 0.0
    %90 = vmatprep.subr.mxu0 0.0
    %91 = vmatpush1.msra.mxu0 0.0
    %92 = vmatprep.subr.mxu0 0.0
    %93 = vmatpush1.msra.mxu0 0.0
    %94 = vmatprep.subr.mxu0 0.0
    %95 = vmatpush1.msra.mxu0 0.0
    %96 = vmatprep.subr.mxu0 0.0
    %97 = vmatpush1.msra.mxu0 0.0
    %98 = vmatprep.subr.mxu0 0.0
    %99 = vmatpush1.msra.mxu0 0.0
    %100 = vmatprep.subr.mxu0 0.0
    %101 = vmatpush1.msra.mxu0 0.0
    %102 = vmatprep.subr.mxu0 0.0
    %103 = vmatpush1.msra.mxu0 0.0
    %104 = vmatprep.subr.mxu0 0.0
    %105 = vmatpush1.msra.mxu0 0.0
    %106 = vmatprep.subr.mxu0 0.0
    %107 = vmatpush1.msra.mxu0 0.0
    %108 = vmatprep.subr.mxu0 0.0
    %109 = vmatpush1.msra.mxu0 0.0
    %110 = vmatprep.subr.mxu0 0.0
    %111 = vmatpush1.msra.mxu0 0.0
    %112 = vmatprep.subr.mxu0 0.0
    %113 = vmatpush1.msra.mxu0 0.0
    %114 = vmatprep.subr.mxu0 0.0
    %115 = vmatpush1.msra.mxu0 %v72
    %116 = vmatprep.subr.mxu0 0.0
    %117 = vmatpush2.msra.mxu0 0.0
    %118 = vmatprep.subr.mxu0 0.0
    %119 = vmatpush2.msra.mxu0 0.0
    %120 = vmatprep.subr.mxu0 0.0
    %121 = vmatpush2.msra.mxu0 0.0
    %122 = vmatprep.subr.mxu0 0.0
    %123 = vmatpush2.msra.mxu0 0.0
    %124 = vmatprep.subr.mxu0 0.0
    %125 = vmatpush2.msra.mxu0 0.0
    %126 = vmatprep.subr.mxu0 0.0
    %127 = vmatpush2.msra.mxu0 0.0
    %128 = vmatprep.subr.mxu0 0.0
    %129 = vmatpush2.msra.mxu0 0.0
    %130 = vmatprep.subr.mxu0 0.0
    %131 = vmatpush2.msra.mxu0 0.0
    %132 = vmatprep.subr.mxu0 0.0
    %133 = vmatpush2.msra.mxu0 0.0
    %134 = vmatprep.subr.mxu0 0.0
    %135 = vmatpush2.msra.mxu0 0.0
    %136 = vmatprep.subr.mxu0 0.0
    %137 = vmatpush2.msra.mxu0 0.0
    %138 = vmatprep.subr.mxu0 0.0
    %139 = vmatpush2.msra.mxu0 0.0
    %140 = vmatprep.subr.mxu0 0.0
    %141 = vmatpush2.msra.mxu0 0.0
    %142 = vmatprep.subr.mxu0 0.0
    %143 = vmatpush2.msra.mxu0 0.0
    %144 = vmatprep.subr.mxu0 0.0
    %145 = vmatpush2.msra.mxu0 0.0
    %146 = vmatprep.subr.mxu0 0.0
    %147 = vmatpush2.msra.mxu0 0.0
    %148 = vmatprep.mubr.f32.mxu0 0.0
    %149 = vmatmul.mubr.f32.gmra.mxu0 %v82
    %v150 = vpop.f32.mrf.mxu0
    %v151 = vadd.f32 %v78, %v150
    %v152 = vpop.f32.mrf.mxu0
    %153 = vdwg.mxu0
    %v154 = vmul.f32 %v151, %v53
    %156 = vrot.lane.b32.xlu0 %v151, 112
    %v157 = vpop.permute.xlu0 %156
    %v159 = vadd.f32 %v154, %v157
    %vm160 = vcmask 130048
    %161 = vst.msk [vmem:[#allocation8] sm:$0xff] %vm160, %v159
    // Predicated region
    $region30: #{tpu_custom_call.1} parent=1 // pred_check
      _
    $region31: #{tpu_custom_call.1} parent=1 // pred_check_branch
      %163 = sbr.rel (0) target = $region33
    $region32: #{tpu_custom_call.1} parent=1 // pred_region
      %s165 = ssub.s32 128, 128
      %166 = vsyncadd [#allocation4], %s165
      %s168 = sshll.u32 [#allocation8], 4
      %s169 = int_to_ptr.vmem [resolvable:$true] %s168
      %171 = dma.vmem_to_hbm [thread:$0]  %s169, 128, %s4, [#allocation4]
    $region33: #{tpu_custom_call.1} parent=1 // pred_fallthru
      _
    // Predicated region
    $region34: #{tpu_custom_call.1} parent=1 // pred_check
      _
    $region35: #{tpu_custom_call.1} parent=1 // pred_check_branch
      %173 = sbr.rel (0) target = $region37
    $region36: #{tpu_custom_call.1} parent=1 // pred_region
      %174 = dma.done [#allocation4], 128
    $region37: #{tpu_custom_call.1} parent=1 // pred_fallthru
      _
    %175 = vsyncpa [#allocation3], 1
    %176 = vsyncpa [#allocation6], 1
    %177 = vsyncpa [#allocation4], 1

</llo_original>
